<compile_context>
chip_gen: v7x
topology: tpu7x:2x2x1
jax: 0.10.0
libtpu: 0.0.40
codegen_flags: <defaults>
</compile_context>

<pallas_src>
import functools

import jax
import jax.numpy as jnp
from jax import lax
from jax.experimental import pallas as pl
from jax.experimental.pallas import tpu as pltpu

DEFAULT_EPS = 1e-6  # LlamaRMSNorm default; pass rms_norm_eps from config if different


# ---- Pallas kernel -----------------------------------------------------------
def _rmsnorm_kernel(x_ref, w_ref, o_ref, *, eps):
    # x_ref: (row_tile, H) tile of flattened token rows; w_ref: (1, H) weight
    # (already in the output dtype).  Stats in f32, rsqrt on the EUP.
    x = x_ref[...].astype(jnp.float32)
    var = jnp.mean(x * x, axis=-1, keepdims=True)
    xn = x * lax.rsqrt(var + eps)
    # Match LlamaRMSNorm: cast normalized activations back to the input dtype,
    # then scale by the broadcast weight row.
    o_ref[...] = xn.astype(o_ref.dtype) * w_ref[...]


# ---- tile sizing -------------------------------------------------------------
def _vmem_budget_bytes():
    """Conservative per-step VMEM budget with headroom, per generation."""
    try:
        cap = pltpu.get_tpu_info().vmem_capacity_bytes  # 64 MiB v7x, 128 MiB v5e/v6e
    except Exception:
        cap = 64 << 20  # assume the most constrained generation (v7x)
    # 75% of physical VMEM, capped at 96 MiB (plenty for a streaming kernel).
    return min(int(cap * 0.75), 96 << 20)


def _pick_row_tile(R, H, in_bytes, out_bytes, budget_bytes):
    # Per-row footprint at steady state: double-buffered input tile,
    # double-buffered output tile, plus ~2 f32 temporaries inside the kernel.
    per_row = H * (2 * in_bytes + 2 * out_bytes + 2 * 4)
    max_rows = max(8, budget_bytes // per_row)
    row_tile = min(1024, (max_rows // 8) * 8)      # multiple of 8, capped
    # Don't over-pad tiny (decode-sized) inputs.
    r_up8 = ((R + 7) // 8) * 8
    row_tile = min(row_tile, r_up8)
    return max(8, row_tile)


# ---- wrapper -----------------------------------------------------------------
def vicuna_norm(hidden_states, weight, *, eps=DEFAULT_EPS, row_tile=None):
    """RMSNorm over the last dim of hidden_states (..., H) with weight (H,)."""
    orig_shape = hidden_states.shape
    H = orig_shape[-1]
    assert H % 128 == 0, "hidden size must be lane-dense (multiple of 128)"

    out_dtype = hidden_states.dtype
    in_bytes = jnp.dtype(hidden_states.dtype).itemsize
    out_bytes = jnp.dtype(out_dtype).itemsize

    x2 = hidden_states.reshape(-1, H)                 # (R, H), lane-dense
    R = x2.shape[0]

    budget = _vmem_budget_bytes()
    if row_tile is None:
        row_tile = _pick_row_tile(R, H, in_bytes, out_bytes, budget)

    # Pad R up to a multiple of row_tile; keeps a uniform, pipelined,
    # parallel grid instead of one giant block for ragged R.
    num_tiles = pl.cdiv(R, row_tile)
    R_pad = num_tiles * row_tile
    if R_pad != R:
        x2 = jnp.pad(x2, ((0, R_pad - R), (0, 0)))

    w2 = weight.astype(out_dtype).reshape(1, H)       # pre-cast once, resident

    # Explicit scoped-VMEM limit: enough for the chosen tile, with headroom,
    # but well under the physical 64 MiB of a v7x TensorCore.
    per_step_bytes = row_tile * H * (2 * in_bytes + 2 * out_bytes + 2 * 4)
    vmem_limit = int(min(max(per_step_bytes * 1.25, 16 << 20), budget))

    cost = pl.CostEstimate(
        flops=3 * R_pad * H,                          # square, mean-acc, scale
        transcendentals=R_pad,                        # one rsqrt per row
        bytes_accessed=R_pad * H * (in_bytes + out_bytes) + H * out_bytes,
    )

    out = pl.pallas_call(
        functools.partial(_rmsnorm_kernel, eps=eps),
        out_shape=jax.ShapeDtypeStruct((R_pad, H), out_dtype),
        grid=(num_tiles,),
        in_specs=[
            pl.BlockSpec((row_tile, H), lambda i: (i, 0)),   # token-row tile
            pl.BlockSpec((1, H), lambda i: (0, 0)),          # weight, resident
        ],
        out_specs=pl.BlockSpec((row_tile, H), lambda i: (i, 0)),
        compiler_params=pltpu.CompilerParams(
            dimension_semantics=("parallel",),               # megacore / 2-TC split
            vmem_limit_bytes=vmem_limit,
        ),
        cost_estimate=cost,
    )(x2, w2)

    if R_pad != R:
        out = out[:R]
    return out.reshape(orig_shape)


# ---- pure-JAX reference (correctness check) ----------------------------------
def reference_norm(hidden_states, weight, eps=DEFAULT_EPS):
    x = hidden_states.astype(jnp.float32)
    var = jnp.mean(x * x, axis=-1, keepdims=True)
    xn = x * lax.rsqrt(var + eps)
    return (weight * xn.astype(hidden_states.dtype)).astype(hidden_states.dtype)


# ---- main --------------------------------------------------------------------
if __name__ == "__main__":
    key = jax.random.PRNGKey(0)
    k_x, k_w, k_x2 = jax.random.split(key, 3)

    B, S, H = 2, 8, 4096  # Vicuna-7B hidden size; still a tiny test tensor
    hidden_states = jax.random.normal(k_x, (B, S, H), jnp.float32)
    weight = 1.0 + 0.1 * jax.random.normal(k_w, (H,), jnp.float32)

    out = vicuna_norm(hidden_states, weight)
    jax.block_until_ready(out)
    ref = reference_norm(hidden_states, weight)
    assert out.shape == (B, S, H)
    assert jnp.allclose(out, ref, rtol=1e-4, atol=1e-4)

    # Ragged row count (B*S not a multiple of the tile) -> exercises padding path.
    B2, S2 = 3, 5
    hidden_states2 = jax.random.normal(k_x2, (B2, S2, H), jnp.float32)
    out2 = vicuna_norm(hidden_states2, weight)
    jax.block_until_ready(out2)
    ref2 = reference_norm(hidden_states2, weight)
    assert out2.shape == (B2, S2, H)
    assert jnp.allclose(out2, ref2, rtol=1e-4, atol=1e-4)

    print("KERNEL_OK")
</pallas_src>

<mosaic_0001>
module attributes {stable_mosaic.version = 11 : i64} {
  func.func @_rmsnorm_kernel(%arg0: i32, %arg1: memref<16x4096xf32, #tpu.memory_space<vmem>>, %arg2: memref<1x4096xf32, #tpu.memory_space<vmem>>, %arg3: memref<16x4096xf32, #tpu.memory_space<vmem>>) attributes {dimension_semantics = [#tpu.dimension_semantics<parallel>], iteration_bounds = array<i64: 1>, scalar_prefetch = 0 : i64, scratch_operands = 0 : i64, tpu.core_type = #tpu.core_type<tc>, window_params = [{transform_indices = @transform_0, window_bounds = array<i64: 16, 4096>}, {pipeline_mode = #tpu.pipeline_mode<synchronous>, transform_indices = @transform_1, window_bounds = array<i64: 1, 4096>}, {transform_indices = @transform_2, window_bounds = array<i64: 16, 4096>}]} {
    %c0 = arith.constant 0 : index
    %c0_0 = arith.constant 0 : index
    %0 = vector.load %arg1[%c0, %c0_0] : memref<16x4096xf32, #tpu.memory_space<vmem>>, vector<16x4096xf32>
    %1 = arith.mulf %0, %0 : vector<16x4096xf32>
    %cst = arith.constant dense<0.000000e+00> : vector<16xf32>
    %2 = vector.multi_reduction <add>, %1, %cst [1] : vector<16x4096xf32> to vector<16xf32>
    %3 = vector.shape_cast %2 : vector<16xf32> to vector<16x1xf32>
    %cst_1 = arith.constant 4.096000e+03 : f32
    %4 = vector.broadcast %cst_1 : f32 to vector<16x1xf32>
    %5 = arith.divf %3, %4 : vector<16x1xf32>
    %cst_2 = arith.constant 9.99999997E-7 : f32
    %6 = vector.broadcast %cst_2 : f32 to vector<16x1xf32>
    %7 = arith.addf %5, %6 : vector<16x1xf32>
    %8 = math.rsqrt %7 : vector<16x1xf32>
    %9 = vector.broadcast %8 : vector<16x1xf32> to vector<16x4096xf32>
    %10 = arith.mulf %0, %9 : vector<16x4096xf32>
    %c0_3 = arith.constant 0 : index
    %c0_4 = arith.constant 0 : index
    %11 = vector.load %arg2[%c0_3, %c0_4] : memref<1x4096xf32, #tpu.memory_space<vmem>>, vector<1x4096xf32>
    %12 = vector.broadcast %11 : vector<1x4096xf32> to vector<16x4096xf32>
    %13 = arith.mulf %10, %12 : vector<16x4096xf32>
    %c0_5 = arith.constant 0 : index
    %c0_6 = arith.constant 0 : index
    %14 = vector.load %arg3[%c0_5, %c0_6] : memref<16x4096xf32, #tpu.memory_space<vmem>>, vector<16x4096xf32>
    tpu.vector_store %arg3[%c0_5, %c0_6], %13 {strides = array<i32>} : memref<16x4096xf32, #tpu.memory_space<vmem>>, vector<16x4096xf32>,
    return
  }
  func.func @transform_0(%arg0: i32) -> (i32, i32) {
    %c0_i32 = arith.constant 0 : i32
    %c0_i32_0 = arith.constant 0 : i32
    return %arg0, %c0_i32 : i32, i32
  }
  func.func @transform_1(%arg0: i32) -> (i32, i32) {
    %c0_i32 = arith.constant 0 : i32
    %c0_i32_0 = arith.constant 0 : i32
    %c0_i32_1 = arith.constant 0 : i32
    return %c0_i32, %c0_i32_0 : i32, i32
  }
  func.func @transform_2(%arg0: i32) -> (i32, i32) {
    %c0_i32 = arith.constant 0 : i32
    %c0_i32_0 = arith.constant 0 : i32
    return %arg0, %c0_i32 : i32, i32
  }
}

</mosaic_0001>

<llo_original>
// kernel: tpu_custom_call.1
$region0: #{tpu_custom_call.1}
  #allocation0 [shape = 'u32[]', space=smem, size = 0x4, offset = 0x4, fixed_abs, tag = 'smem constant byte address 0x4 - core index']
  #allocation1 [shape = 'u32[144,128]{1,0:T(1,128)}', space=vmem, size = 0x12000, scoped, tag = 'internal scratch']
  %s0 = inlined_call_operand.hbm [shape: f32[16,4096], index: 0, kind: input, shape index: {}]
  %s1 = inlined_call_operand.hbm [shape: f32[1,4096], index: 1, kind: input, shape index: {}]
  %s2 = inlined_call_operand.hbm [shape: f32[16,4096], index: 2, kind: output, shape index: {}]
  %s3 = sld [smem:[#allocation0]]
  $region26: #{tpu_custom_call.1} parent=0
    _
  %s5 = ssub.s32 1, %s3
  %s6 = scalar_select 0, %s5, %s3
  $region1: #{tpu_custom_call.1} parent=0
    #allocation2 [shape = 'u8[262144]{0}', space=vmem, size = 0x40000, scoped, tag = 'input window, operand 0, single buffered']
    #allocation3 [shape = 's32[1]{0}', space=sflag, size = 0x4, scoped, tag = 'scoped memory for tpu_custom_call.1']
    #allocation4 [shape = 's32[1]{0}', space=sflag, size = 0x4, scoped, tag = 'scoped memory for tpu_custom_call.1']
    #allocation5 [shape = 'u8[16384]{0}', space=vmem, size = 0x4000, scoped, tag = 'input window, operand 1, single buffered']
    #allocation6 [shape = 's32[1]{0}', space=sflag, size = 0x4, scoped, tag = 'scoped memory for tpu_custom_call.1']
    #allocation7 [shape = 'u8[262144]{0}', space=vmem, size = 0x40000, scoped, tag = 'output window, operand 0, single buffered']
    %7 = vsyncpa [#allocation3], 0
    %8 = vsyncpa [#allocation6], 0
    %9 = vsyncpa [#allocation4], 0
    // Predicated region
    $region2: #{tpu_custom_call.1} parent=1 // pred_check
      _
    $region3: #{tpu_custom_call.1} parent=1 // pred_check_branch
      %11 = sbr.rel (0) target = $region5
    $region4: #{tpu_custom_call.1} parent=1 // pred_region
      %s13 = ssub.s32 8192, 8192
      %14 = vsyncadd [#allocation3], %s13
      %s15 = sshll.u32 [#allocation2], 4
      %s16 = int_to_ptr.vmem [resolvable:$true] %s15
      %21 = dma.hbm_to_vmem [thread:$0]  %s0, 8192, %s16, [#allocation3], 4096, 4096, 256
    $region5: #{tpu_custom_call.1} parent=1 // pred_fallthru
      _
    // Predicated region
    $region6: #{tpu_custom_call.1} parent=1 // pred_check
      _
    $region7: #{tpu_custom_call.1} parent=1 // pred_check_branch
      %23 = sbr.rel (0) target = $region9
    $region8: #{tpu_custom_call.1} parent=1 // pred_region
      %s25 = ssub.s32 512, 512
      %26 = vsyncadd [#allocation6], %s25
      %s28 = sshll.u32 [#allocation5], 4
      %s29 = int_to_ptr.vmem [resolvable:$true] %s28
      %31 = dma.hbm_to_vmem [thread:$0]  %s1, 512, %s29, [#allocation6]
    $region9: #{tpu_custom_call.1} parent=1 // pred_fallthru
      _
    // Predicated region
    $region10: #{tpu_custom_call.1} parent=1 // pred_check
      _
    $region11: #{tpu_custom_call.1} parent=1 // pred_check_branch
      %33 = sbr.rel (0) target = $region13
    $region12: #{tpu_custom_call.1} parent=1 // pred_region
      %34 = dma.done [#allocation3], 8192
    $region13: #{tpu_custom_call.1} parent=1 // pred_fallthru
      _
    // Predicated region
    $region14: #{tpu_custom_call.1} parent=1 // pred_check
      _
    $region15: #{tpu_custom_call.1} parent=1 // pred_check_branch
      %36 = sbr.rel (0) target = $region17
    $region16: #{tpu_custom_call.1} parent=1 // pred_region
      %37 = dma.done [#allocation6], 512
    $region17: #{tpu_custom_call.1} parent=1 // pred_fallthru
      _
    %v38 = vld [vmem:[#allocation2] sm:$0xff]
    %v39 = vld [vmem:[#allocation2 + $0x8] sm:$0xff]
    %v40 = vld [vmem:[#allocation2 + $0x10] sm:$0xff]
    %v41 = vld [vmem:[#allocation2 + $0x18] sm:$0xff]
    %v42 = vld [vmem:[#allocation2 + $0x20] sm:$0xff]
    %v43 = vld [vmem:[#allocation2 + $0x28] sm:$0xff]
    %v44 = vld [vmem:[#allocation2 + $0x30] sm:$0xff]
    %v45 = vld [vmem:[#allocation2 + $0x38] sm:$0xff]
    %v46 = vld [vmem:[#allocation2 + $0x40] sm:$0xff]
    %v47 = vld [vmem:[#allocation2 + $0x48] sm:$0xff]
    %v48 = vld [vmem:[#allocation2 + $0x50] sm:$0xff]
    %v49 = vld [vmem:[#allocation2 + $0x58] sm:$0xff]
    %v50 = vld [vmem:[#allocation2 + $0x60] sm:$0xff]
    %v51 = vld [vmem:[#allocation2 + $0x68] sm:$0xff]
    %v52 = vld [vmem:[#allocation2 + $0x70] sm:$0xff]
    %v53 = vld [vmem:[#allocation2 + $0x78] sm:$0xff]
    %v54 = vld [vmem:[#allocation2 + $0x80] sm:$0xff]
    %v55 = vld [vmem:[#allocation2 + $0x88] sm:$0xff]
    %v56 = vld [vmem:[#allocation2 + $0x90] sm:$0xff]
    %v57 = vld [vmem:[#allocation2 + $0x98] sm:$0xff]
    %v58 = vld [vmem:[#allocation2 + $0xa0] sm:$0xff]
    %v59 = vld [vmem:[#allocation2 + $0xa8] sm:$0xff]
    %v60 = vld [vmem:[#allocation2 + $0xb0] sm:$0xff]
    %v61 = vld [vmem:[#allocation2 + $0xb8] sm:$0xff]
    %v62 = vld [vmem:[#allocation2 + $0xc0] sm:$0xff]
    %v63 = vld [vmem:[#allocation2 + $0xc8] sm:$0xff]
    %v64 = vld [vmem:[#allocation2 + $0xd0] sm:$0xff]
    %v65 = vld [vmem:[#allocation2 + $0xd8] sm:$0xff]
    %v66 = vld [vmem:[#allocation2 + $0xe0] sm:$0xff]
    %v67 = vld [vmem:[#allocation2 + $0xe8] sm:$0xff]
    %v68 = vld [vmem:[#allocation2 + $0xf0] sm:$0xff]
    %v69 = vld [vmem:[#allocation2 + $0xf8] sm:$0xff]
    %v70 = vld [vmem:[#allocation2 + $0x100] sm:$0xff]
    %v71 = vld [vmem:[#allocation2 + $0x108] sm:$0xff]
    %v72 = vld [vmem:[#allocation2 + $0x110] sm:$0xff]
    %v73 = vld [vmem:[#allocation2 + $0x118] sm:$0xff]
    %v74 = vld [vmem:[#allocation2 + $0x120] sm:$0xff]
    %v75 = vld [vmem:[#allocation2 + $0x128] sm:$0xff]
    %v76 = vld [vmem:[#allocation2 + $0x130] sm:$0xff]
    %v77 = vld [vmem:[#allocation2 + $0x138] sm:$0xff]
    %v78 = vld [vmem:[#allocation2 + $0x140] sm:$0xff]
    %v79 = vld [vmem:[#allocation2 + $0x148] sm:$0xff]
    %v80 = vld [vmem:[#allocation2 + $0x150] sm:$0xff]
    %v81 = vld [vmem:[#allocation2 + $0x158] sm:$0xff]
    %v82 = vld [vmem:[#allocation2 + $0x160] sm:$0xff]
    %v83 = vld [vmem:[#allocation2 + $0x168] sm:$0xff]
    %v84 = vld [vmem:[#allocation2 + $0x170] sm:$0xff]
    %v85 = vld [vmem:[#allocation2 + $0x178] sm:$0xff]
    %v86 = vld [vmem:[#allocation2 + $0x180] sm:$0xff]
    %v87 = vld [vmem:[#allocation2 + $0x188] sm:$0xff]
    %v88 = vld [vmem:[#allocation2 + $0x190] sm:$0xff]
    %v89 = vld [vmem:[#allocation2 + $0x198] sm:$0xff]
    %v90 = vld [vmem:[#allocation2 + $0x1a0] sm:$0xff]
    %v91 = vld [vmem:[#allocation2 + $0x1a8] sm:$0xff]
    %v92 = vld [vmem:[#allocation2 + $0x1b0] sm:$0xff]
    %v93 = vld [vmem:[#allocation2 + $0x1b8] sm:$0xff]
    %v94 = vld [vmem:[#allocation2 + $0x1c0] sm:$0xff]
    %v95 = vld [vmem:[#allocation2 + $0x1c8] sm:$0xff]
    %v96 = vld [vmem:[#allocation2 + $0x1d0] sm:$0xff]
    %v97 = vld [vmem:[#allocation2 + $0x1d8] sm:$0xff]
    %v98 = vld [vmem:[#allocation2 + $0x1e0] sm:$0xff]
    %v99 = vld [vmem:[#allocation2 + $0x1e8] sm:$0xff]
    %v100 = vld [vmem:[#allocation2 + $0x1f0] sm:$0xff]
    %v101 = vld [vmem:[#allocation2 + $0x1f8] sm:$0xff]
    %v102 = vmul.f32 %v38, %v38
    %v103 = vmul.f32 %v39, %v39
    %v104 = vmul.f32 %v40, %v40
    %v105 = vmul.f32 %v41, %v41
    %v106 = vmul.f32 %v42, %v42
    %v107 = vmul.f32 %v43, %v43
    %v108 = vmul.f32 %v44, %v44
    %v109 = vmul.f32 %v45, %v45
    %v110 = vmul.f32 %v46, %v46
    %v111 = vmul.f32 %v47, %v47
    %v112 = vmul.f32 %v48, %v48
    %v113 = vmul.f32 %v49, %v49
    %v114 = vmul.f32 %v50, %v50
    %v115 = vmul.f32 %v51, %v51
    %v116 = vmul.f32 %v52, %v52
    %v117 = vmul.f32 %v53, %v53
    %v118 = vmul.f32 %v54, %v54
    %v119 = vmul.f32 %v55, %v55
    %v120 = vmul.f32 %v56, %v56
    %v121 = vmul.f32 %v57, %v57
    %v122 = vmul.f32 %v58, %v58
    %v123 = vmul.f32 %v59, %v59
    %v124 = vmul.f32 %v60, %v60
    %v125 = vmul.f32 %v61, %v61
    %v126 = vmul.f32 %v62, %v62
    %v127 = vmul.f32 %v63, %v63
    %v128 = vmul.f32 %v64, %v64
    %v129 = vmul.f32 %v65, %v65
    %v130 = vmul.f32 %v66, %v66
    %v131 = vmul.f32 %v67, %v67
    %v132 = vmul.f32 %v68, %v68
    %v133 = vmul.f32 %v69, %v69
    %v134 = vmul.f32 %v70, %v70
    %v135 = vmul.f32 %v71, %v71
    %v136 = vmul.f32 %v72, %v72
    %v137 = vmul.f32 %v73, %v73
    %v138 = vmul.f32 %v74, %v74
    %v139 = vmul.f32 %v75, %v75
    %v140 = vmul.f32 %v76, %v76
    %v141 = vmul.f32 %v77, %v77
    %v142 = vmul.f32 %v78, %v78
    %v143 = vmul.f32 %v79, %v79
    %v144 = vmul.f32 %v80, %v80
    %v145 = vmul.f32 %v81, %v81
    %v146 = vmul.f32 %v82, %v82
    %v147 = vmul.f32 %v83, %v83
    %v148 = vmul.f32 %v84, %v84
    %v149 = vmul.f32 %v85, %v85
    %v150 = vmul.f32 %v86, %v86
    %v151 = vmul.f32 %v87, %v87
    %v152 = vmul.f32 %v88, %v88
    %v153 = vmul.f32 %v89, %v89
    %v154 = vmul.f32 %v90, %v90
    %v155 = vmul.f32 %v91, %v91
    %v156 = vmul.f32 %v92, %v92
    %v157 = vmul.f32 %v93, %v93
    %v158 = vmul.f32 %v94, %v94
    %v159 = vmul.f32 %v95, %v95
    %v160 = vmul.f32 %v96, %v96
    %v161 = vmul.f32 %v97, %v97
    %v162 = vmul.f32 %v98, %v98
    %v163 = vmul.f32 %v99, %v99
    %v164 = vmul.f32 %v100, %v100
    %v165 = vmul.f32 %v101, %v101
    %v166 = vadd.f32 %v102, %v103
    %v167 = vadd.f32 %v166, %v104
    %v168 = vadd.f32 %v167, %v105
    %v169 = vadd.f32 %v168, %v106
    %v170 = vadd.f32 %v169, %v107
    %v171 = vadd.f32 %v170, %v108
    %v172 = vadd.f32 %v171, %v109
    %v173 = vadd.f32 %v172, %v110
    %v174 = vadd.f32 %v173, %v111
    %v175 = vadd.f32 %v174, %v112
    %v176 = vadd.f32 %v175, %v113
    %v177 = vadd.f32 %v176, %v114
    %v178 = vadd.f32 %v177, %v115
    %v179 = vadd.f32 %v178, %v116
    %v180 = vadd.f32 %v179, %v117
    %v181 = vadd.f32 %v180, %v118
    %v182 = vadd.f32 %v181, %v119
    %v183 = vadd.f32 %v182, %v120
    %v184 = vadd.f32 %v183, %v121
    %v185 = vadd.f32 %v184, %v122
    %v186 = vadd.f32 %v185, %v123
    %v187 = vadd.f32 %v186, %v124
    %v188 = vadd.f32 %v187, %v125
    %v189 = vadd.f32 %v188, %v126
    %v190 = vadd.f32 %v189, %v127
    %v191 = vadd.f32 %v190, %v128
    %v192 = vadd.f32 %v191, %v129
    %v193 = vadd.f32 %v192, %v130
    %v194 = vadd.f32 %v193, %v131
    %v195 = vadd.f32 %v194, %v132
    %v196 = vadd.f32 %v195, %v133
    %197 = vadd.xlane.f32.xlu0 %v196
    %v198 = vpop.xlane.xlu0 %197
    %v199 = vadd.f32 %v134, %v135
    %v200 = vadd.f32 %v199, %v136
    %v201 = vadd.f32 %v200, %v137
    %v202 = vadd.f32 %v201, %v138
    %v203 = vadd.f32 %v202, %v139
    %v204 = vadd.f32 %v203, %v140
    %v205 = vadd.f32 %v204, %v141
    %v206 = vadd.f32 %v205, %v142
    %v207 = vadd.f32 %v206, %v143
    %v208 = vadd.f32 %v207, %v144
    %v209 = vadd.f32 %v208, %v145
    %v210 = vadd.f32 %v209, %v146
    %v211 = vadd.f32 %v210, %v147
    %v212 = vadd.f32 %v211, %v148
    %v213 = vadd.f32 %v212, %v149
    %v214 = vadd.f32 %v213, %v150
    %v215 = vadd.f32 %v214, %v151
    %v216 = vadd.f32 %v215, %v152
    %v217 = vadd.f32 %v216, %v153
    %v218 = vadd.f32 %v217, %v154
    %v219 = vadd.f32 %v218, %v155
    %v220 = vadd.f32 %v219, %v156
    %v221 = vadd.f32 %v220, %v157
    %v222 = vadd.f32 %v221, %v158
    %v223 = vadd.f32 %v222, %v159
    %v224 = vadd.f32 %v223, %v160
    %v225 = vadd.f32 %v224, %v161
    %v226 = vadd.f32 %v225, %v162
    %v227 = vadd.f32 %v226, %v163
    %v228 = vadd.f32 %v227, %v164
    %v229 = vadd.f32 %v228, %v165
    %230 = vadd.xlane.f32.xlu0 %v229
    %v231 = vpop.xlane.xlu0 %230
    %v232 = vrcp.pop 4096.0
    %v233 = vmul.f32 %v198, %v232
    %v234 = vmul.f32 %v231, %v232
    %v235 = vadd.f32 %v233, 1e-06
    %v236 = vadd.f32 %v234, 1e-06
    %v237 = vrsqrt.pop %v235
    %v238 = vrsqrt.pop %v236
    %v239 = vmul.f32 %v38, %v237
    %v240 = vmul.f32 %v39, %v237
    %v241 = vmul.f32 %v40, %v237
    %v242 = vmul.f32 %v41, %v237
    %v243 = vmul.f32 %v42, %v237
    %v244 = vmul.f32 %v43, %v237
    %v245 = vmul.f32 %v44, %v237
    %v246 = vmul.f32 %v45, %v237
    %v247 = vmul.f32 %v46, %v237
    %v248 = vmul.f32 %v47, %v237
    %v249 = vmul.f32 %v48, %v237
    %v250 = vmul.f32 %v49, %v237
    %v251 = vmul.f32 %v50, %v237
    %v252 = vmul.f32 %v51, %v237
    %v253 = vmul.f32 %v52, %v237
    %v254 = vmul.f32 %v53, %v237
    %v255 = vmul.f32 %v54, %v237
    %v256 = vmul.f32 %v55, %v237
    %v257 = vmul.f32 %v56, %v237
    %v258 = vmul.f32 %v57, %v237
    %v259 = vmul.f32 %v58, %v237
    %v260 = vmul.f32 %v59, %v237
    %v261 = vmul.f32 %v60, %v237
    %v262 = vmul.f32 %v61, %v237
    %v263 = vmul.f32 %v62, %v237
    %v264 = vmul.f32 %v63, %v237
    %v265 = vmul.f32 %v64, %v237
    %v266 = vmul.f32 %v65, %v237
    %v267 = vmul.f32 %v66, %v237
    %v268 = vmul.f32 %v67, %v237
    %v269 = vmul.f32 %v68, %v237
    %v270 = vmul.f32 %v69, %v237
    %v271 = vmul.f32 %v70, %v238
    %v272 = vmul.f32 %v71, %v238
    %v273 = vmul.f32 %v72, %v238
    %v274 = vmul.f32 %v73, %v238
    %v275 = vmul.f32 %v74, %v238
    %v276 = vmul.f32 %v75, %v238
    %v277 = vmul.f32 %v76, %v238
    %v278 = vmul.f32 %v77, %v238
    %v279 = vmul.f32 %v78, %v238
    %v280 = vmul.f32 %v79, %v238
    %v281 = vmul.f32 %v80, %v238
    %v282 = vmul.f32 %v81, %v238
    %v283 = vmul.f32 %v82, %v238
    %v284 = vmul.f32 %v83, %v238
    %v285 = vmul.f32 %v84, %v238
    %v286 = vmul.f32 %v85, %v238
    %v287 = vmul.f32 %v86, %v238
    %v288 = vmul.f32 %v87, %v238
    %v289 = vmul.f32 %v88, %v238
    %v290 = vmul.f32 %v89, %v238
    %v291 = vmul.f32 %v90, %v238
    %v292 = vmul.f32 %v91, %v238
    %v293 = vmul.f32 %v92, %v238
    %v294 = vmul.f32 %v93, %v238
    %v295 = vmul.f32 %v94, %v238
    %v296 = vmul.f32 %v95, %v238
    %v297 = vmul.f32 %v96, %v238
    %v298 = vmul.f32 %v97, %v238
    %v299 = vmul.f32 %v98, %v238
    %v300 = vmul.f32 %v99, %v238
    %v301 = vmul.f32 %v100, %v238
    %v302 = vmul.f32 %v101, %v238
    %v303 = vld [vmem:[#allocation5] sm:$0xff]
    %v304 = vld [vmem:[#allocation5 + $0x8] sm:$0xff]
    %v305 = vld [vmem:[#allocation5 + $0x10] sm:$0xff]
    %v306 = vld [vmem:[#allocation5 + $0x18] sm:$0xff]
    %v311 = vlaneseq
    %v312 = vshrl.u32 %v311, 7
    %v313 = vsub.s32 0, %v312
    %v314 = vrot.slane %v303, %v313
    %v315 = vlaneseq
    %v316 = vshrl.u32 %v315, 7
    %v317 = vsub.s32 1, %v316
    %v318 = vrot.slane %v303, %v317
    %v319 = vlaneseq
    %v320 = vshrl.u32 %v319, 7
    %v321 = vsub.s32 2, %v320
    %v322 = vrot.slane %v303, %v321
    %v323 = vlaneseq
    %v324 = vshrl.u32 %v323, 7
    %v325 = vsub.s32 3, %v324
    %v326 = vrot.slane %v303, %v325
    %v327 = vlaneseq
    %v328 = vshrl.u32 %v327, 7
    %v329 = vsub.s32 4, %v328
    %v330 = vrot.slane %v303, %v329
    %v331 = vlaneseq
    %v332 = vshrl.u32 %v331, 7
    %v333 = vsub.s32 5, %v332
    %v334 = vrot.slane %v303, %v333
    %v335 = vlaneseq
    %v336 = vshrl.u32 %v335, 7
    %v337 = vsub.s32 6, %v336
    %v338 = vrot.slane %v303, %v337
    %v339 = vlaneseq
    %v340 = vshrl.u32 %v339, 7
    %v341 = vsub.s32 7, %v340
    %v342 = vrot.slane %v303, %v341
    %v343 = vlaneseq
    %v344 = vshrl.u32 %v343, 7
    %v345 = vsub.s32 0, %v344
    %v346 = vrot.slane %v304, %v345
    %v347 = vlaneseq
    %v348 = vshrl.u32 %v347, 7
    %v349 = vsub.s32 1, %v348
    %v350 = vrot.slane %v304, %v349
    %v351 = vlaneseq
    %v352 = vshrl.u32 %v351, 7
    %v353 = vsub.s32 2, %v352
    %v354 = vrot.slane %v304, %v353
    %v355 = vlaneseq
    %v356 = vshrl.u32 %v355, 7
    %v357 = vsub.s32 3, %v356
    %v358 = vrot.slane %v304, %v357
    %v359 = vlaneseq
    %v360 = vshrl.u32 %v359, 7
    %v361 = vsub.s32 4, %v360
    %v362 = vrot.slane %v304, %v361
    %v363 = vlaneseq
    %v364 = vshrl.u32 %v363, 7
    %v365 = vsub.s32 5, %v364
    %v366 = vrot.slane %v304, %v365
    %v367 = vlaneseq
    %v368 = vshrl.u32 %v367, 7
    %v369 = vsub.s32 6, %v368
    %v370 = vrot.slane %v304, %v369
    %v371 = vlaneseq
    %v372 = vshrl.u32 %v371, 7
    %v373 = vsub.s32 7, %v372
    %v374 = vrot.slane %v304, %v373
    %v375 = vlaneseq
    %v376 = vshrl.u32 %v375, 7
    %v377 = vsub.s32 0, %v376
    %v378 = vrot.slane %v305, %v377
    %v379 = vlaneseq
    %v380 = vshrl.u32 %v379, 7
    %v381 = vsub.s32 1, %v380
    %v382 = vrot.slane %v305, %v381
    %v383 = vlaneseq
    %v384 = vshrl.u32 %v383, 7
    %v385 = vsub.s32 2, %v384
    %v386 = vrot.slane %v305, %v385
    %v387 = vlaneseq
    %v388 = vshrl.u32 %v387, 7
    %v389 = vsub.s32 3, %v388
    %v390 = vrot.slane %v305, %v389
    %v391 = vlaneseq
    %v392 = vshrl.u32 %v391, 7
    %v393 = vsub.s32 4, %v392
    %v394 = vrot.slane %v305, %v393
    %v395 = vlaneseq
    %v396 = vshrl.u32 %v395, 7
    %v397 = vsub.s32 5, %v396
    %v398 = vrot.slane %v305, %v397
    %v399 = vlaneseq
    %v400 = vshrl.u32 %v399, 7
    %v401 = vsub.s32 6, %v400
    %v402 = vrot.slane %v305, %v401
    %v403 = vlaneseq
    %v404 = vshrl.u32 %v403, 7
    %v405 = vsub.s32 7, %v404
    %v406 = vrot.slane %v305, %v405
    %v407 = vlaneseq
    %v408 = vshrl.u32 %v407, 7
    %v409 = vsub.s32 0, %v408
    %v410 = vrot.slane %v306, %v409
    %v411 = vlaneseq
    %v412 = vshrl.u32 %v411, 7
    %v413 = vsub.s32 1, %v412
    %v414 = vrot.slane %v306, %v413
    %v415 = vlaneseq
    %v416 = vshrl.u32 %v415, 7
    %v417 = vsub.s32 2, %v416
    %v418 = vrot.slane %v306, %v417
    %v419 = vlaneseq
    %v420 = vshrl.u32 %v419, 7
    %v421 = vsub.s32 3, %v420
    %v422 = vrot.slane %v306, %v421
    %v423 = vlaneseq
    %v424 = vshrl.u32 %v423, 7
    %v425 = vsub.s32 4, %v424
    %v426 = vrot.slane %v306, %v425
    %v427 = vlaneseq
    %v428 = vshrl.u32 %v427, 7
    %v429 = vsub.s32 5, %v428
    %v430 = vrot.slane %v306, %v429
    %v431 = vlaneseq
    %v432 = vshrl.u32 %v431, 7
    %v433 = vsub.s32 6, %v432
    %v434 = vrot.slane %v306, %v433
    %v435 = vlaneseq
    %v436 = vshrl.u32 %v435, 7
    %v437 = vsub.s32 7, %v436
    %v438 = vrot.slane %v306, %v437
    %v471 = vmul.f32 %v239, %v314
    %v472 = vmul.f32 %v240, %v318
    %v473 = vmul.f32 %v241, %v322
    %v474 = vmul.f32 %v242, %v326
    %v475 = vmul.f32 %v243, %v330
    %v476 = vmul.f32 %v244, %v334
    %v477 = vmul.f32 %v245, %v338
    %v478 = vmul.f32 %v246, %v342
    %v479 = vmul.f32 %v247, %v346
    %v480 = vmul.f32 %v248, %v350
    %v481 = vmul.f32 %v249, %v354
    %v482 = vmul.f32 %v250, %v358
    %v483 = vmul.f32 %v251, %v362
    %v484 = vmul.f32 %v252, %v366
    %v485 = vmul.f32 %v253, %v370
    %v486 = vmul.f32 %v254, %v374
    %v487 = vmul.f32 %v255, %v378
    %v488 = vmul.f32 %v256, %v382
    %v489 = vmul.f32 %v257, %v386
    %v490 = vmul.f32 %v258, %v390
    %v491 = vmul.f32 %v259, %v394
    %v492 = vmul.f32 %v260, %v398
    %v493 = vmul.f32 %v261, %v402
    %v494 = vmul.f32 %v262, %v406
    %v495 = vmul.f32 %v263, %v410
    %v496 = vmul.f32 %v264, %v414
    %v497 = vmul.f32 %v265, %v418
    %v498 = vmul.f32 %v266, %v422
    %v499 = vmul.f32 %v267, %v426
    %v500 = vmul.f32 %v268, %v430
    %v501 = vmul.f32 %v269, %v434
    %v502 = vmul.f32 %v270, %v438
    %v503 = vmul.f32 %v271, %v314
    %v504 = vmul.f32 %v272, %v318
    %v505 = vmul.f32 %v273, %v322
    %v506 = vmul.f32 %v274, %v326
    %v507 = vmul.f32 %v275, %v330
    %v508 = vmul.f32 %v276, %v334
    %v509 = vmul.f32 %v277, %v338
    %v510 = vmul.f32 %v278, %v342
    %v511 = vmul.f32 %v279, %v346
    %v512 = vmul.f32 %v280, %v350
    %v513 = vmul.f32 %v281, %v354
    %v514 = vmul.f32 %v282, %v358
    %v515 = vmul.f32 %v283, %v362
    %v516 = vmul.f32 %v284, %v366
    %v517 = vmul.f32 %v285, %v370
    %v518 = vmul.f32 %v286, %v374
    %v519 = vmul.f32 %v287, %v378
    %v520 = vmul.f32 %v288, %v382
    %v521 = vmul.f32 %v289, %v386
    %v522 = vmul.f32 %v290, %v390
    %v523 = vmul.f32 %v291, %v394
    %v524 = vmul.f32 %v292, %v398
    %v525 = vmul.f32 %v293, %v402
    %v526 = vmul.f32 %v294, %v406
    %v527 = vmul.f32 %v295, %v410
    %v528 = vmul.f32 %v296, %v414
    %v529 = vmul.f32 %v297, %v418
    %v530 = vmul.f32 %v298, %v422
    %v531 = vmul.f32 %v299, %v426
    %v532 = vmul.f32 %v300, %v430
    %v533 = vmul.f32 %v301, %v434
    %v534 = vmul.f32 %v302, %v438
    %535 = vst [vmem:[#allocation7] sm:$0xff] %v471
    %536 = vst [vmem:[#allocation7 + $0x8] sm:$0xff] %v472
    %537 = vst [vmem:[#allocation7 + $0x10] sm:$0xff] %v473
    %538 = vst [vmem:[#allocation7 + $0x18] sm:$0xff] %v474
    %539 = vst [vmem:[#allocation7 + $0x20] sm:$0xff] %v475
    %540 = vst [vmem:[#allocation7 + $0x28] sm:$0xff] %v476
    %541 = vst [vmem:[#allocation7 + $0x30] sm:$0xff] %v477
    %542 = vst [vmem:[#allocation7 + $0x38] sm:$0xff] %v478
    %543 = vst [vmem:[#allocation7 + $0x40] sm:$0xff] %v479
    %544 = vst [vmem:[#allocation7 + $0x48] sm:$0xff] %v480
    %545 = vst [vmem:[#allocation7 + $0x50] sm:$0xff] %v481
    %546 = vst [vmem:[#allocation7 + $0x58] sm:$0xff] %v482
    %547 = vst [vmem:[#allocation7 + $0x60] sm:$0xff] %v483
    %548 = vst [vmem:[#allocation7 + $0x68] sm:$0xff] %v484
    %549 = vst [vmem:[#allocation7 + $0x70] sm:$0xff] %v485
    %550 = vst [vmem:[#allocation7 + $0x78] sm:$0xff] %v486
    %551 = vst [vmem:[#allocation7 + $0x80] sm:$0xff] %v487
    %552 = vst [vmem:[#allocation7 + $0x88] sm:$0xff] %v488
    %553 = vst [vmem:[#allocation7 + $0x90] sm:$0xff] %v489
    %554 = vst [vmem:[#allocation7 + $0x98] sm:$0xff] %v490
    %555 = vst [vmem:[#allocation7 + $0xa0] sm:$0xff] %v491
    %556 = vst [vmem:[#allocation7 + $0xa8] sm:$0xff] %v492
    %557 = vst [vmem:[#allocation7 + $0xb0] sm:$0xff] %v493
    %558 = vst [vmem:[#allocation7 + $0xb8] sm:$0xff] %v494
    %559 = vst [vmem:[#allocation7 + $0xc0] sm:$0xff] %v495
    %560 = vst [vmem:[#allocation7 + $0xc8] sm:$0xff] %v496
    %561 = vst [vmem:[#allocation7 + $0xd0] sm:$0xff] %v497
    %562 = vst [vmem:[#allocation7 + $0xd8] sm:$0xff] %v498
    %563 = vst [vmem:[#allocation7 + $0xe0] sm:$0xff] %v499
    %564 = vst [vmem:[#allocation7 + $0xe8] sm:$0xff] %v500
    %565 = vst [vmem:[#allocation7 + $0xf0] sm:$0xff] %v501
    %566 = vst [vmem:[#allocation7 + $0xf8] sm:$0xff] %v502
    %567 = vst [vmem:[#allocation7 + $0x100] sm:$0xff] %v503
    %568 = vst [vmem:[#allocation7 + $0x108] sm:$0xff] %v504
    %569 = vst [vmem:[#allocation7 + $0x110] sm:$0xff] %v505
    %570 = vst [vmem:[#allocation7 + $0x118] sm:$0xff] %v506
    %571 = vst [vmem:[#allocation7 + $0x120] sm:$0xff] %v507
    %572 = vst [vmem:[#allocation7 + $0x128] sm:$0xff] %v508
    %573 = vst [vmem:[#allocation7 + $0x130] sm:$0xff] %v509
    %574 = vst [vmem:[#allocation7 + $0x138] sm:$0xff] %v510
    %575 = vst [vmem:[#allocation7 + $0x140] sm:$0xff] %v511
    %576 = vst [vmem:[#allocation7 + $0x148] sm:$0xff] %v512
    %577 = vst [vmem:[#allocation7 + $0x150] sm:$0xff] %v513
    %578 = vst [vmem:[#allocation7 + $0x158] sm:$0xff] %v514
    %579 = vst [vmem:[#allocation7 + $0x160] sm:$0xff] %v515
    %580 = vst [vmem:[#allocation7 + $0x168] sm:$0xff] %v516
    %581 = vst [vmem:[#allocation7 + $0x170] sm:$0xff] %v517
    %582 = vst [vmem:[#allocation7 + $0x178] sm:$0xff] %v518
    %583 = vst [vmem:[#allocation7 + $0x180] sm:$0xff] %v519
    %584 = vst [vmem:[#allocation7 + $0x188] sm:$0xff] %v520
    %585 = vst [vmem:[#allocation7 + $0x190] sm:$0xff] %v521
    %586 = vst [vmem:[#allocation7 + $0x198] sm:$0xff] %v522
    %587 = vst [vmem:[#allocation7 + $0x1a0] sm:$0xff] %v523
    %588 = vst [vmem:[#allocation7 + $0x1a8] sm:$0xff] %v524
    %589 = vst [vmem:[#allocation7 + $0x1b0] sm:$0xff] %v525
    %590 = vst [vmem:[#allocation7 + $0x1b8] sm:$0xff] %v526
    %591 = vst [vmem:[#allocation7 + $0x1c0] sm:$0xff] %v527
    %592 = vst [vmem:[#allocation7 + $0x1c8] sm:$0xff] %v528
    %593 = vst [vmem:[#allocation7 + $0x1d0] sm:$0xff] %v529
    %594 = vst [vmem:[#allocation7 + $0x1d8] sm:$0xff] %v530
    %595 = vst [vmem:[#allocation7 + $0x1e0] sm:$0xff] %v531
    %596 = vst [vmem:[#allocation7 + $0x1e8] sm:$0xff] %v532
    %597 = vst [vmem:[#allocation7 + $0x1f0] sm:$0xff] %v533
    %598 = vst [vmem:[#allocation7 + $0x1f8] sm:$0xff] %v534
    // Predicated region
    $region18: #{tpu_custom_call.1} parent=1 // pred_check
      _
    $region19: #{tpu_custom_call.1} parent=1 // pred_check_branch
      %600 = sbr.rel (0) target = $region21
    $region20: #{tpu_custom_call.1} parent=1 // pred_region
      %s602 = ssub.s32 8192, 8192
      %603 = vsyncadd [#allocation4], %s602
      %s604 = sshll.u32 [#allocation7], 4
      %s605 = int_to_ptr.vmem [resolvable:$true] %s604
      %610 = dma.vmem_to_hbm [thread:$0]  %s605, 8192, %s2, [#allocation4], 4096, 4096, 256
    $region21: #{tpu_custom_call.1} parent=1 // pred_fallthru
      _
    // Predicated region
    $region22: #{tpu_custom_call.1} parent=1 // pred_check
      _
    $region23: #{tpu_custom_call.1} parent=1 // pred_check_branch
      %612 = sbr.rel (0) target = $region25
    $region24: #{tpu_custom_call.1} parent=1 // pred_region
      %613 = dma.done [#allocation4], 8192
    $region25: #{tpu_custom_call.1} parent=1 // pred_fallthru
      _
    %614 = vsyncpa [#allocation3], 1
    %615 = vsyncpa [#allocation6], 1
    %616 = vsyncpa [#allocation4], 1

</llo_original>
